<compile_context>
chip_gen: v7x
topology: tpu7x:2x2x1
jax: 0.10.0
libtpu: 0.0.40
codegen_flags: <defaults>
</compile_context>

<pallas_src>
import functools

import jax
import jax.numpy as jnp
from jax.experimental import pallas as pl
from jax.experimental.pallas import tpu as pltpu

LN_EPS = 1e-5  # PyTorch nn.LayerNorm default


def _layernorm(x, gamma, beta):
    # x: (R, E) f32; gamma/beta: (1, E). Always f32 math (v5e has no bf16 VPU).
    mu = jnp.mean(x, axis=-1, keepdims=True)
    var = jnp.mean(jnp.square(x - mu), axis=-1, keepdims=True)
    return (x - mu) * jax.lax.rsqrt(var + LN_EPS) * gamma + beta


# ----------------------------------------------------------------------------
# Kernel 1: fused LN1 + QKV projection, output in head-major (B, H, T, D).
# Runs once per row -- hoists all projection work out of the flash loop.
# ----------------------------------------------------------------------------
def qkv_proj_kernel(x_ref, g1_ref, b1_ref, wqkv_ref, q_ref, k_ref, v_ref, *,
                    num_heads):
    H = num_heads
    Tr, E = x_ref.shape[1], x_ref.shape[2]
    D = E // H

    h = _layernorm(x_ref[0].astype(jnp.float32), g1_ref[...], b1_ref[...])
    # One lane-dense (Tr, E) @ (E, 3E) matmul: columns [Q | K | V].
    qkv = jnp.dot(h.astype(wqkv_ref.dtype), wqkv_ref[...],
                  preferred_element_type=jnp.float32)              # (Tr, 3E)
    scale = D ** -0.5
    for hh in range(H):                                            # static, once per row tile
        q_ref[0, hh] = (qkv[:, hh * D:(hh + 1) * D] * scale).astype(q_ref.dtype)
        k_ref[0, hh] = qkv[:, E + hh * D:E + (hh + 1) * D].astype(k_ref.dtype)
        v_ref[0, hh] = qkv[:, 2 * E + hh * D:2 * E + (hh + 1) * D].astype(v_ref.dtype)


# ----------------------------------------------------------------------------
# Kernel 2: flash attention (head-batched) + output projection + residual.
#   y1 = x + proj(softmax(q k^T masked) v)
# ----------------------------------------------------------------------------
def flash_attn_kernel(x_ref, q_ref, k_ref, v_ref, wp_ref, bp_ref, o_ref,
                      m_scr, l_scr, acc_scr):
    H, Tq, D = q_ref.shape[1], q_ref.shape[2], q_ref.shape[3]
    Tk = k_ref.shape[2]

    qi = pl.program_id(1)
    ki = pl.program_id(2)
    q_lo = qi * Tq
    q_hi = q_lo + Tq - 1
    k_lo = ki * Tk
    k_hi = k_lo + Tk - 1

    @pl.when(ki == 0)
    def _init():
        m_scr[...] = jnp.full_like(m_scr, -jnp.inf)
        l_scr[...] = jnp.zeros_like(l_scr)
        acc_scr[...] = jnp.zeros_like(acc_scr)

    def update(s):
        # s: (H, Tq, Tk) f32; all stats / accumulators stay f32.
        m_prev = m_scr[...]                                        # (H, Tq, 1)
        m_new = jnp.maximum(m_prev, jnp.max(s, axis=-1, keepdims=True))
        alpha = jnp.exp(m_prev - m_new)
        p = jnp.exp(s - m_new)                                     # (H, Tq, Tk)
        l_scr[...] = alpha * l_scr[...] + jnp.sum(p, axis=-1, keepdims=True)
        acc_scr[...] = alpha * acc_scr[...] + jnp.einsum(
            'hqk,hkd->hqd', p.astype(v_ref.dtype), v_ref[0],
            preferred_element_type=jnp.float32)
        m_scr[...] = m_new

    # Skip KV tiles entirely above the causal diagonal (their DMA is also
    # avoided via the clamped index_map in the wrapper).
    @pl.when(k_lo <= q_hi)
    def _compute():
        s = jnp.einsum('hqd,hkd->hqk', q_ref[0], k_ref[0],
                       preferred_element_type=jnp.float32)         # (H, Tq, Tk)

        @pl.when(k_hi <= q_lo)      # fully below the diagonal: no mask needed
        def _fast():
            update(s)

        @pl.when(k_hi > q_lo)       # diagonal-crossing tile: apply causal mask
        def _masked():
            row = q_lo + jax.lax.broadcasted_iota(jnp.int32, (Tq, Tk), 0)
            col = k_lo + jax.lax.broadcasted_iota(jnp.int32, (Tq, Tk), 1)
            causal = (col <= row)[None]                            # (1, Tq, Tk)
            update(jnp.where(causal, s, -jnp.inf))

    @pl.when(ki == pl.num_programs(2) - 1)
    def _finalize():
        inv_l = pl.reciprocal(l_scr[...], approx=True)             # (H, Tq, 1), EUP
        attn = acc_scr[...] * inv_l                                # (H, Tq, D)
        attn2d = jnp.concatenate([attn[h] for h in range(H)], axis=1)  # (Tq, H*D)
        y = jnp.dot(attn2d.astype(wp_ref.dtype), wp_ref[...],
                    preferred_element_type=jnp.float32)
        o_ref[0] = (x_ref[0].astype(jnp.float32) + y + bp_ref[...]).astype(o_ref.dtype)


def attention_block(x, ln1_g, ln1_b, w_qkv, w_proj, b_proj, *, num_heads,
                    q_tile=256, kv_tile=256, proj_row_tile=256,
                    compute_dtype=None, vmem_limit_bytes=64 << 20):
    B, T, E = x.shape
    H = num_heads
    D = E // H
    cdt = x.dtype if compute_dtype is None else compute_dtype

    # ---- pass 1: LN1 + QKV projection, head-major layout -------------------
    Tr = min(proj_row_tile, T)
    assert T % Tr == 0
    q_hm, k_hm, v_hm = pl.pallas_call(
        functools.partial(qkv_proj_kernel, num_heads=H),
        out_shape=(jax.ShapeDtypeStruct((B, H, T, D), cdt),
                   jax.ShapeDtypeStruct((B, H, T, D), cdt),
                   jax.ShapeDtypeStruct((B, H, T, D), cdt)),
        grid_spec=pltpu.PrefetchScalarGridSpec(
            num_scalar_prefetch=0,
            grid=(B, T // Tr),
            in_specs=[
                pl.BlockSpec((1, Tr, E), lambda b, r: (b, r, 0)),        # x
                pl.BlockSpec((1, E), lambda b, r: (0, 0)),               # ln1 gamma
                pl.BlockSpec((1, E), lambda b, r: (0, 0)),               # ln1 beta
                pl.BlockSpec((E, 3 * E), lambda b, r: (0, 0)),           # W_qkv
            ],
            out_specs=(
                pl.BlockSpec((1, H, Tr, D), lambda b, r: (b, 0, r, 0)),
                pl.BlockSpec((1, H, Tr, D), lambda b, r: (b, 0, r, 0)),
                pl.BlockSpec((1, H, Tr, D), lambda b, r: (b, 0, r, 0)),
            ),
        ),
        compiler_params=pltpu.CompilerParams(
            dimension_semantics=("parallel", "parallel"),
            vmem_limit_bytes=vmem_limit_bytes),
    )(x, ln1_g.astype(jnp.float32), ln1_b.astype(jnp.float32), w_qkv.astype(cdt))

    # ---- pass 2: flash attention + output projection + residual ------------
    Tq = min(q_tile, T)
    Tk = min(kv_tile, T)
    assert T % Tq == 0 and T % Tk == 0
    nQ, nKV = T // Tq, T // Tk

    def kv_map(b, qi, ki):
        # Clamp to the last causally-useful block so upper-triangular steps
        # reuse the previous block (same index => no DMA).
        return (b, 0, jnp.minimum(ki, (qi * Tq + Tq - 1) // Tk), 0)

    return pl.pallas_call(
        flash_attn_kernel,
        out_shape=jax.ShapeDtypeStruct((B, T, E), x.dtype),
        grid_spec=pltpu.PrefetchScalarGridSpec(
            num_scalar_prefetch=0,
            grid=(B, nQ, nKV),
            in_specs=[
                pl.BlockSpec((1, Tq, E), lambda b, qi, ki: (b, qi, 0)),        # x (residual)
                pl.BlockSpec((1, H, Tq, D), lambda b, qi, ki: (b, 0, qi, 0)),  # q
                pl.BlockSpec((1, H, Tk, D), kv_map),                           # k
                pl.BlockSpec((1, H, Tk, D), kv_map),                           # v
                pl.BlockSpec((E, E), lambda b, qi, ki: (0, 0)),                # W_proj
                pl.BlockSpec((1, E), lambda b, qi, ki: (0, 0)),                # b_proj
            ],
            out_specs=pl.BlockSpec((1, Tq, E), lambda b, qi, ki: (b, qi, 0)),
            scratch_shapes=[
                pltpu.VMEM((H, Tq, 1), jnp.float32),     # running max
                pltpu.VMEM((H, Tq, 1), jnp.float32),     # running denom
                pltpu.VMEM((H, Tq, D), jnp.float32),     # accumulator
            ],
        ),
        compiler_params=pltpu.CompilerParams(
            dimension_semantics=("parallel", "parallel", "arbitrary"),
            vmem_limit_bytes=vmem_limit_bytes),
    )(x, q_hm, k_hm, v_hm, w_proj.astype(cdt), b_proj.astype(jnp.float32))


# ----------------------------------------------------------------------------
# Kernel 3: out = y + relu(ln2(y) @ W1 + b1) @ W2 + b2
# Row-tiled, lane-dense, with the 4E hidden dimension K-tiled (grid axis 1).
# ----------------------------------------------------------------------------
def ffn_kernel(y_ref, g2_ref, b2_ref, w1_ref, c1_ref, w2_ref, c2_ref, o_ref,
               h_scr, acc_scr):
    k = pl.program_id(1)

    @pl.when(k == 0)
    def _init():
        y = y_ref[...].astype(jnp.float32)
        h_scr[...] = _layernorm(y, g2_ref[...], b2_ref[...]).astype(h_scr.dtype)
        acc_scr[...] = jnp.zeros_like(acc_scr)

    h1 = jnp.dot(h_scr[...], w1_ref[...], preferred_element_type=jnp.float32)
    h1 = jnp.maximum(h1 + c1_ref[...], 0.0)
    acc_scr[...] += jnp.dot(h1.astype(w2_ref.dtype), w2_ref[...],
                            preferred_element_type=jnp.float32)

    @pl.when(k == pl.num_programs(1) - 1)
    def _finalize():
        o_ref[...] = (y_ref[...].astype(jnp.float32) + acc_scr[...]
                      + c2_ref[...]).astype(o_ref.dtype)


def ffn_block(y, ln2_g, ln2_b, w1, c1, w2, c2, *, row_tile=1024, hidden_tile=512,
              compute_dtype=None, vmem_limit_bytes=64 << 20):
    B, T, E = y.shape
    Hdim = w1.shape[1]
    cdt = y.dtype if compute_dtype is None else compute_dtype

    rows = B * T
    Tr = min(row_tile, rows)
    Th = min(hidden_tile, Hdim)
    assert rows % Tr == 0 and Hdim % Th == 0
    y2 = y.reshape(rows, E)

    out = pl.pallas_call(
        ffn_kernel,
        out_shape=jax.ShapeDtypeStruct((rows, E), y.dtype),
        grid_spec=pltpu.PrefetchScalarGridSpec(
            num_scalar_prefetch=0,
            grid=(rows // Tr, Hdim // Th),
            in_specs=[
                pl.BlockSpec((Tr, E), lambda r, k: (r, 0)),      # y rows
                pl.BlockSpec((1, E), lambda r, k: (0, 0)),       # ln2 gamma
                pl.BlockSpec((1, E), lambda r, k: (0, 0)),       # ln2 beta
                pl.BlockSpec((E, Th), lambda r, k: (0, k)),      # W1 hidden slice
                pl.BlockSpec((1, Th), lambda r, k: (0, k)),      # b1 hidden slice
                pl.BlockSpec((Th, E), lambda r, k: (k, 0)),      # W2 hidden slice
                pl.BlockSpec((1, E), lambda r, k: (0, 0)),       # b2
            ],
            out_specs=pl.BlockSpec((Tr, E), lambda r, k: (r, 0)),
            scratch_shapes=[
                pltpu.VMEM((Tr, E), cdt),            # ln2(y), reused across hidden chunks
                pltpu.VMEM((Tr, E), jnp.float32),    # f32 accumulator
            ],
        ),
        compiler_params=pltpu.CompilerParams(
            dimension_semantics=("parallel", "arbitrary"),
            vmem_limit_bytes=vmem_limit_bytes),
    )(y2, ln2_g.astype(jnp.float32), ln2_b.astype(jnp.float32),
      w1.astype(cdt), c1.astype(jnp.float32), w2.astype(cdt),
      c2.astype(jnp.float32))
    return out.reshape(B, T, E)


def transformer_block(x, params, *, num_heads, q_tile=256, kv_tile=256,
                      proj_row_tile=256, row_tile=1024, hidden_tile=512,
                      compute_dtype=None, vmem_limit_bytes=64 << 20):
    """Forward of the PyTorch `Block` (eval mode, dropout = identity)."""
    y1 = attention_block(x, params['ln1_g'], params['ln1_b'],
                         params['w_qkv'], params['w_proj'], params['b_proj'],
                         num_heads=num_heads, q_tile=q_tile, kv_tile=kv_tile,
                         proj_row_tile=proj_row_tile, compute_dtype=compute_dtype,
                         vmem_limit_bytes=vmem_limit_bytes)
    return ffn_block(y1, params['ln2_g'], params['ln2_b'],
                     params['w_ff1'], params['b_ff1'],
                     params['w_ff2'], params['b_ff2'],
                     row_tile=row_tile, hidden_tile=hidden_tile,
                     compute_dtype=compute_dtype,
                     vmem_limit_bytes=vmem_limit_bytes)


# ----------------------------------------------------------------------------
# Pure-JAX reference mirroring the PyTorch module (eval mode).
# ----------------------------------------------------------------------------
def reference(x, params, *, num_heads):
    B, T, E = x.shape
    H = num_heads
    D = E // H

    def ln(z, g, b):
        mu = z.mean(-1, keepdims=True)
        var = ((z - mu) ** 2).mean(-1, keepdims=True)
        return (z - mu) * jax.lax.rsqrt(var + LN_EPS) * g + b

    h = ln(x, params['ln1_g'][0], params['ln1_b'][0])
    qkv = h @ params['w_qkv']                                   # (B, T, 3E)
    q, k, v = qkv[..., :E], qkv[..., E:2 * E], qkv[..., 2 * E:]

    def heads(z):
        return z.reshape(B, T, H, D).transpose(0, 2, 1, 3)      # (B, H, T, D)

    qh, kh, vh = heads(q), heads(k), heads(v)
    wei = jnp.einsum('bhtd,bhsd->bhts', qh, kh) * D ** (-0.5)
    mask = jnp.tril(jnp.ones((T, T), bool))
    wei = jnp.where(mask[None, None], wei, -jnp.inf)
    wei = jax.nn.softmax(wei, axis=-1)
    o = jnp.einsum('bhts,bhsd->bhtd', wei, vh)
    o = o.transpose(0, 2, 1, 3).reshape(B, T, E)
    y1 = x + o @ params['w_proj'] + params['b_proj'][0]

    h2 = ln(y1, params['ln2_g'][0], params['ln2_b'][0])
    f = jnp.maximum(h2 @ params['w_ff1'] + params['b_ff1'][0], 0.0)
    f = f @ params['w_ff2'] + params['b_ff2'][0]
    return y1 + f


if __name__ == "__main__":
    # Small shapes consistent with the module: n_embd=32, n_head=4 (head_size=8),
    # T=8, batch=2.
    B, T, E, H = 2, 8, 32, 4

    key = jax.random.PRNGKey(0)
    ks = jax.random.split(key, 12)
    x = jax.random.normal(ks[0], (B, T, E), dtype=jnp.float32)

    params = dict(
        ln1_g=jnp.ones((1, E), jnp.float32) + 0.1 * jax.random.normal(ks[1], (1, E)),
        ln1_b=0.1 * jax.random.normal(ks[2], (1, E), dtype=jnp.float32),
        # Fused QKV weight: columns [Wq | Wk | Wv], each (E, E) with head h in
        # cols h*D:(h+1)*D of its section (== PyTorch per-head Linear weight.T).
        w_qkv=0.1 * jax.random.normal(ks[3], (E, 3 * E), dtype=jnp.float32),
        # Output projection: PyTorch proj.weight (E, H*D), stored transposed.
        w_proj=0.1 * jax.random.normal(ks[4], (E, E), dtype=jnp.float32),
        b_proj=0.1 * jax.random.normal(ks[5], (1, E), dtype=jnp.float32),
        ln2_g=jnp.ones((1, E), jnp.float32) + 0.1 * jax.random.normal(ks[6], (1, E)),
        ln2_b=0.1 * jax.random.normal(ks[7], (1, E), dtype=jnp.float32),
        w_ff1=0.1 * jax.random.normal(ks[8], (E, 4 * E), dtype=jnp.float32),
        b_ff1=0.1 * jax.random.normal(ks[9], (1, 4 * E), dtype=jnp.float32),
        w_ff2=0.1 * jax.random.normal(ks[10], (4 * E, E), dtype=jnp.float32),
        b_ff2=0.1 * jax.random.normal(ks[11], (1, E), dtype=jnp.float32),
    )

    out = transformer_block(x, params, num_heads=H)
    out = jax.block_until_ready(out)

    ref = reference(x, params, num_heads=H)
    assert out.shape == (B, T, E)
    max_err = float(jnp.max(jnp.abs(out - ref)))
    assert jnp.allclose(out, ref, atol=5e-3, rtol=5e-3), f"mismatch: {max_err}"

    print("KERNEL_OK")
</pallas_src>

<mosaic_0001>
module attributes {stable_mosaic.version = 11 : i64} {
  func.func @qkv_proj_kernel(%arg0: i32, %arg1: i32, %arg2: memref<1x8x32xf32, #tpu.memory_space<vmem>>, %arg3: memref<1x32xf32, #tpu.memory_space<vmem>>, %arg4: memref<1x32xf32, #tpu.memory_space<vmem>>, %arg5: memref<32x96xf32, #tpu.memory_space<vmem>>, %arg6: memref<1x4x8x8xf32, #tpu.memory_space<vmem>>, %arg7: memref<1x4x8x8xf32, #tpu.memory_space<vmem>>, %arg8: memref<1x4x8x8xf32, #tpu.memory_space<vmem>>) attributes {dimension_semantics = [#tpu.dimension_semantics<parallel>, #tpu.dimension_semantics<parallel>], iteration_bounds = array<i64: 2, 1>, scalar_prefetch = 0 : i64, scratch_operands = 0 : i64, tpu.core_type = #tpu.core_type<tc>, window_params = [{transform_indices = @transform_0, window_bounds = array<i64: 1, 8, 32>}, {pipeline_mode = #tpu.pipeline_mode<synchronous>, transform_indices = @transform_1, window_bounds = array<i64: 1, 32>}, {pipeline_mode = #tpu.pipeline_mode<synchronous>, transform_indices = @transform_2, window_bounds = array<i64: 1, 32>}, {pipeline_mode = #tpu.pipeline_mode<synchronous>, transform_indices = @transform_3, window_bounds = array<i64: 32, 96>}, {transform_indices = @transform_4, window_bounds = array<i64: 1, 4, 8, 8>}, {transform_indices = @transform_5, window_bounds = array<i64: 1, 4, 8, 8>}, {transform_indices = @transform_6, window_bounds = array<i64: 1, 4, 8, 8>}]} {
    %c0 = arith.constant 0 : index
    %c0_0 = arith.constant 0 : index
    %c0_1 = arith.constant 0 : index
    %0 = vector.load %arg2[%c0, %c0_0, %c0_1] : memref<1x8x32xf32, #tpu.memory_space<vmem>>, vector<1x8x32xf32>
    %1 = vector.shape_cast %0 : vector<1x8x32xf32> to vector<8x32xf32>
    %c0_2 = arith.constant 0 : index
    %c0_3 = arith.constant 0 : index
    %2 = vector.load %arg3[%c0_2, %c0_3] : memref<1x32xf32, #tpu.memory_space<vmem>>, vector<1x32xf32>
    %c0_4 = arith.constant 0 : index
    %c0_5 = arith.constant 0 : index
    %3 = vector.load %arg4[%c0_4, %c0_5] : memref<1x32xf32, #tpu.memory_space<vmem>>, vector<1x32xf32>
    %cst = arith.constant dense<0.000000e+00> : vector<8xf32>
    %4 = vector.multi_reduction <add>, %1, %cst [1] : vector<8x32xf32> to vector<8xf32>
    %5 = vector.shape_cast %4 : vector<8xf32> to vector<8x1xf32>
    %cst_6 = arith.constant 3.200000e+01 : f32
    %6 = vector.broadcast %cst_6 : f32 to vector<8x1xf32>
    %7 = arith.divf %5, %6 : vector<8x1xf32>
    %8 = vector.broadcast %7 : vector<8x1xf32> to vector<8x32xf32>
    %9 = arith.subf %1, %8 : vector<8x32xf32>
    %10 = arith.mulf %9, %9 : vector<8x32xf32>
    %cst_7 = arith.constant dense<0.000000e+00> : vector<8xf32>
    %11 = vector.multi_reduction <add>, %10, %cst_7 [1] : vector<8x32xf32> to vector<8xf32>
    %12 = vector.shape_cast %11 : vector<8xf32> to vector<8x1xf32>
    %cst_8 = arith.constant 3.200000e+01 : f32
    %13 = vector.broadcast %cst_8 : f32 to vector<8x1xf32>
    %14 = arith.divf %12, %13 : vector<8x1xf32>
    %15 = vector.broadcast %7 : vector<8x1xf32> to vector<8x32xf32>
    %16 = arith.subf %1, %15 : vector<8x32xf32>
    %cst_9 = arith.constant 9.99999974E-6 : f32
    %17 = vector.broadcast %cst_9 : f32 to vector<8x1xf32>
    %18 = arith.addf %14, %17 : vector<8x1xf32>
    %19 = math.rsqrt %18 : vector<8x1xf32>
    %20 = vector.broadcast %19 : vector<8x1xf32> to vector<8x32xf32>
    %21 = arith.mulf %16, %20 : vector<8x32xf32>
    %22 = vector.broadcast %2 : vector<1x32xf32> to vector<8x32xf32>
    %23 = arith.mulf %21, %22 : vector<8x32xf32>
    %24 = vector.broadcast %3 : vector<1x32xf32> to vector<8x32xf32>
    %25 = arith.addf %23, %24 : vector<8x32xf32>
    %c0_10 = arith.constant 0 : index
    %c0_11 = arith.constant 0 : index
    %26 = vector.load %arg5[%c0_10, %c0_11] : memref<32x96xf32, #tpu.memory_space<vmem>>, vector<32x96xf32>
    %cst_12 = arith.constant dense<0.000000e+00> : vector<8x96xf32>
    %27 = tpu.matmul %25, %26, %cst_12 {dimension_numbers = #tpu.dot_dimension_numbers<[1], [0], [0], [1], [0, 0, 1, 1], [], []>} : vector<8x32xf32>, vector<32x96xf32>, vector<8x96xf32> -> vector<8x96xf32>
    %28 = vector.extract_strided_slice %27 {offsets = [0, 0], sizes = [8, 8], strides = [1, 1]} : vector<8x96xf32> to vector<8x8xf32>
    %cst_13 = arith.constant 0.353553385 : f32
    %29 = vector.broadcast %cst_13 : f32 to vector<8x8xf32>
    %30 = arith.mulf %28, %29 : vector<8x8xf32>
    %c0_14 = arith.constant 0 : index
    %c0_15 = arith.constant 0 : index
    %c0_16 = arith.constant 0 : index
    %c0_17 = arith.constant 0 : index
    %31 = vector.load %arg6[%c0_14, %c0_15, %c0_16, %c0_17] : memref<1x4x8x8xf32, #tpu.memory_space<vmem>>, vector<1x1x8x8xf32>
    %32 = vector.shape_cast %31 : vector<1x1x8x8xf32> to vector<8x8xf32>
    %33 = vector.shape_cast %30 : vector<8x8xf32> to vector<1x1x8x8xf32>
    tpu.vector_store %arg6[%c0_14, %c0_15, %c0_16, %c0_17], %33 {strides = array<i32>} : memref<1x4x8x8xf32, #tpu.memory_space<vmem>>, vector<1x1x8x8xf32>,
    %34 = vector.extract_strided_slice %27 {offsets = [0, 32], sizes = [8, 8], strides = [1, 1]} : vector<8x96xf32> to vector<8x8xf32>
    %c0_18 = arith.constant 0 : index
    %c0_19 = arith.constant 0 : index
    %c0_20 = arith.constant 0 : index
    %c0_21 = arith.constant 0 : index
    %35 = vector.load %arg7[%c0_18, %c0_19, %c0_20, %c0_21] : memref<1x4x8x8xf32, #tpu.memory_space<vmem>>, vector<1x1x8x8xf32>
    %36 = vector.shape_cast %35 : vector<1x1x8x8xf32> to vector<8x8xf32>
    %37 = vector.shape_cast %34 : vector<8x8xf32> to vector<1x1x8x8xf32>
    tpu.vector_store %arg7[%c0_18, %c0_19, %c0_20, %c0_21], %37 {strides = array<i32>} : memref<1x4x8x8xf32, #tpu.memory_space<vmem>>, vector<1x1x8x8xf32>,
    %38 = vector.extract_strided_slice %27 {offsets = [0, 64], sizes = [8, 8], strides = [1, 1]} : vector<8x96xf32> to vector<8x8xf32>
    %c0_22 = arith.constant 0 : index
    %c0_23 = arith.constant 0 : index
    %c0_24 = arith.constant 0 : index
    %c0_25 = arith.constant 0 : index
    %39 = vector.load %arg8[%c0_22, %c0_23, %c0_24, %c0_25] : memref<1x4x8x8xf32, #tpu.memory_space<vmem>>, vector<1x1x8x8xf32>
    %40 = vector.shape_cast %39 : vector<1x1x8x8xf32> to vector<8x8xf32>
    %41 = vector.shape_cast %38 : vector<8x8xf32> to vector<1x1x8x8xf32>
    tpu.vector_store %arg8[%c0_22, %c0_23, %c0_24, %c0_25], %41 {strides = array<i32>} : memref<1x4x8x8xf32, #tpu.memory_space<vmem>>, vector<1x1x8x8xf32>,
    %42 = vector.extract_strided_slice %27 {offsets = [0, 8], sizes = [8, 8], strides = [1, 1]} : vector<8x96xf32> to vector<8x8xf32>
    %cst_26 = arith.constant 0.353553385 : f32
    %43 = vector.broadcast %cst_26 : f32 to vector<8x8xf32>
    %44 = arith.mulf %42, %43 : vector<8x8xf32>
    %c0_27 = arith.constant 0 : index
    %c1 = arith.constant 1 : index
    %c0_28 = arith.constant 0 : index
    %c0_29 = arith.constant 0 : index
    %45 = vector.load %arg6[%c0_27, %c1, %c0_28, %c0_29] : memref<1x4x8x8xf32, #tpu.memory_space<vmem>>, vector<1x1x8x8xf32>
    %46 = vector.shape_cast %45 : vector<1x1x8x8xf32> to vector<8x8xf32>
    %47 = vector.shape_cast %44 : vector<8x8xf32> to vector<1x1x8x8xf32>
    tpu.vector_store %arg6[%c0_27, %c1, %c0_28, %c0_29], %47 {strides = array<i32>} : memref<1x4x8x8xf32, #tpu.memory_space<vmem>>, vector<1x1x8x8xf32>,
    %48 = vector.extract_strided_slice %27 {offsets = [0, 40], sizes = [8, 8], strides = [1, 1]} : vector<8x96xf32> to vector<8x8xf32>
    %c0_30 = arith.constant 0 : index
    %c1_31 = arith.constant 1 : index
    %c0_32 = arith.constant 0 : index
    %c0_33 = arith.constant 0 : index
    %49 = vector.load %arg7[%c0_30, %c1_31, %c0_32, %c0_33] : memref<1x4x8x8xf32, #tpu.memory_space<vmem>>, vector<1x1x8x8xf32>
    %50 = vector.shape_cast %49 : vector<1x1x8x8xf32> to vector<8x8xf32>
    %51 = vector.shape_cast %48 : vector<8x8xf32> to vector<1x1x8x8xf32>
    tpu.vector_store %arg7[%c0_30, %c1_31, %c0_32, %c0_33], %51 {strides = array<i32>} : memref<1x4x8x8xf32, #tpu.memory_space<vmem>>, vector<1x1x8x8xf32>,
    %52 = vector.extract_strided_slice %27 {offsets = [0, 72], sizes = [8, 8], strides = [1, 1]} : vector<8x96xf32> to vector<8x8xf32>
    %c0_34 = arith.constant 0 : index
    %c1_35 = arith.constant 1 : index
    %c0_36 = arith.constant 0 : index
    %c0_37 = arith.constant 0 : index
    %53 = vector.load %arg8[%c0_34, %c1_35, %c0_36, %c0_37] : memref<1x4x8x8xf32, #tpu.memory_space<vmem>>, vector<1x1x8x8xf32>
    %54 = vector.shape_cast %53 : vector<1x1x8x8xf32> to vector<8x8xf32>
    %55 = vector.shape_cast %52 : vector<8x8xf32> to vector<1x1x8x8xf32>
    tpu.vector_store %arg8[%c0_34, %c1_35, %c0_36, %c0_37], %55 {strides = array<i32>} : memref<1x4x8x8xf32, #tpu.memory_space<vmem>>, vector<1x1x8x8xf32>,
    %56 = vector.extract_strided_slice %27 {offsets = [0, 16], sizes = [8, 8], strides = [1, 1]} : vector<8x96xf32> to vector<8x8xf32>
    %cst_38 = arith.constant 0.353553385 : f32
    %57 = vector.broadcast %cst_38 : f32 to vector<8x8xf32>
    %58 = arith.mulf %56, %57 : vector<8x8xf32>
    %c0_39 = arith.constant 0 : index
    %c2 = arith.constant 2 : index
    %c0_40 = arith.constant 0 : index
    %c0_41 = arith.constant 0 : index
    %59 = vector.load %arg6[%c0_39, %c2, %c0_40, %c0_41] : memref<1x4x8x8xf32, #tpu.memory_space<vmem>>, vector<1x1x8x8xf32>
    %60 = vector.shape_cast %59 : vector<1x1x8x8xf32> to vector<8x8xf32>
    %61 = vector.shape_cast %58 : vector<8x8xf32> to vector<1x1x8x8xf32>
    tpu.vector_store %arg6[%c0_39, %c2, %c0_40, %c0_41], %61 {strides = array<i32>} : memref<1x4x8x8xf32, #tpu.memory_space<vmem>>, vector<1x1x8x8xf32>,
    %62 = vector.extract_strided_slice %27 {offsets = [0, 48], sizes = [8, 8], strides = [1, 1]} : vector<8x96xf32> to vector<8x8xf32>
    %c0_42 = arith.constant 0 : index
    %c2_43 = arith.constant 2 : index
    %c0_44 = arith.constant 0 : index
    %c0_45 = arith.constant 0 : index
    %63 = vector.load %arg7[%c0_42, %c2_43, %c0_44, %c0_45] : memref<1x4x8x8xf32, #tpu.memory_space<vmem>>, vector<1x1x8x8xf32>
    %64 = vector.shape_cast %63 : vector<1x1x8x8xf32> to vector<8x8xf32>
    %65 = vector.shape_cast %62 : vector<8x8xf32> to vector<1x1x8x8xf32>
    tpu.vector_store %arg7[%c0_42, %c2_43, %c0_44, %c0_45], %65 {strides = array<i32>} : memref<1x4x8x8xf32, #tpu.memory_space<vmem>>, vector<1x1x8x8xf32>,
    %66 = vector.extract_strided_slice %27 {offsets = [0, 80], sizes = [8, 8], strides = [1, 1]} : vector<8x96xf32> to vector<8x8xf32>
    %c0_46 = arith.constant 0 : index
    %c2_47 = arith.constant 2 : index
    %c0_48 = arith.constant 0 : index
    %c0_49 = arith.constant 0 : index
    %67 = vector.load %arg8[%c0_46, %c2_47, %c0_48, %c0_49] : memref<1x4x8x8xf32, #tpu.memory_space<vmem>>, vector<1x1x8x8xf32>
    %68 = vector.shape_cast %67 : vector<1x1x8x8xf32> to vector<8x8xf32>
    %69 = vector.shape_cast %66 : vector<8x8xf32> to vector<1x1x8x8xf32>
    tpu.vector_store %arg8[%c0_46, %c2_47, %c0_48, %c0_49], %69 {strides = array<i32>} : memref<1x4x8x8xf32, #tpu.memory_space<vmem>>, vector<1x1x8x8xf32>,
    %70 = vector.extract_strided_slice %27 {offsets = [0, 24], sizes = [8, 8], strides = [1, 1]} : vector<8x96xf32> to vector<8x8xf32>
    %cst_50 = arith.constant 0.353553385 : f32
    %71 = vector.broadcast %cst_50 : f32 to vector<8x8xf32>
    %72 = arith.mulf %70, %71 : vector<8x8xf32>
    %c0_51 = arith.constant 0 : index
    %c3 = arith.constant 3 : index
    %c0_52 = arith.constant 0 : index
    %c0_53 = arith.constant 0 : index
    %73 = vector.load %arg6[%c0_51, %c3, %c0_52, %c0_53] : memref<1x4x8x8xf32, #tpu.memory_space<vmem>>, vector<1x1x8x8xf32>
    %74 = vector.shape_cast %73 : vector<1x1x8x8xf32> to vector<8x8xf32>
    %75 = vector.shape_cast %72 : vector<8x8xf32> to vector<1x1x8x8xf32>
    tpu.vector_store %arg6[%c0_51, %c3, %c0_52, %c0_53], %75 {strides = array<i32>} : memref<1x4x8x8xf32, #tpu.memory_space<vmem>>, vector<1x1x8x8xf32>,
    %76 = vector.extract_strided_slice %27 {offsets = [0, 56], sizes = [8, 8], strides = [1, 1]} : vector<8x96xf32> to vector<8x8xf32>
    %c0_54 = arith.constant 0 : index
    %c3_55 = arith.constant 3 : index
    %c0_56 = arith.constant 0 : index
    %c0_57 = arith.constant 0 : index
    %77 = vector.load %arg7[%c0_54, %c3_55, %c0_56, %c0_57] : memref<1x4x8x8xf32, #tpu.memory_space<vmem>>, vector<1x1x8x8xf32>
    %78 = vector.shape_cast %77 : vector<1x1x8x8xf32> to vector<8x8xf32>
    %79 = vector.shape_cast %76 : vector<8x8xf32> to vector<1x1x8x8xf32>
    tpu.vector_store %arg7[%c0_54, %c3_55, %c0_56, %c0_57], %79 {strides = array<i32>} : memref<1x4x8x8xf32, #tpu.memory_space<vmem>>, vector<1x1x8x8xf32>,
    %80 = vector.extract_strided_slice %27 {offsets = [0, 88], sizes = [8, 8], strides = [1, 1]} : vector<8x96xf32> to vector<8x8xf32>
    %c0_58 = arith.constant 0 : index
    %c3_59 = arith.constant 3 : index
    %c0_60 = arith.constant 0 : index
    %c0_61 = arith.constant 0 : index
    %81 = vector.load %arg8[%c0_58, %c3_59, %c0_60, %c0_61] : memref<1x4x8x8xf32, #tpu.memory_space<vmem>>, vector<1x1x8x8xf32>
    %82 = vector.shape_cast %81 : vector<1x1x8x8xf32> to vector<8x8xf32>
    %83 = vector.shape_cast %80 : vector<8x8xf32> to vector<1x1x8x8xf32>
    tpu.vector_store %arg8[%c0_58, %c3_59, %c0_60, %c0_61], %83 {strides = array<i32>} : memref<1x4x8x8xf32, #tpu.memory_space<vmem>>, vector<1x1x8x8xf32>,
    return
  }
  func.func @transform_0(%arg0: i32, %arg1: i32) -> (i32, i32, i32) {
    %c0_i32 = arith.constant 0 : i32
    %c0_i32_0 = arith.constant 0 : i32
    return %arg0, %arg1, %c0_i32 : i32, i32, i32
  }
  func.func @transform_1(%arg0: i32, %arg1: i32) -> (i32, i32) {
    %c0_i32 = arith.constant 0 : i32
    %c0_i32_0 = arith.constant 0 : i32
    %c0_i32_1 = arith.constant 0 : i32
    return %c0_i32, %c0_i32_0 : i32, i32
  }
  func.func @transform_2(%arg0: i32, %arg1: i32) -> (i32, i32) {
    %c0_i32 = arith.constant 0 : i32
    %c0_i32_0 = arith.constant 0 : i32
    %c0_i32_1 = arith.constant 0 : i32
    return %c0_i32, %c0_i32_0 : i32, i32
  }
  func.func @transform_3(%arg0: i32, %arg1: i32) -> (i32, i32) {
    %c0_i32 = arith.constant 0 : i32
    %c0_i32_0 = arith.constant 0 : i32
    %c0_i32_1 = arith.constant 0 : i32
    return %c0_i32, %c0_i32_0 : i32, i32
  }
  func.func @transform_4(%arg0: i32, %arg1: i32) -> (i32, i32, i32, i32) {
    %c0_i32 = arith.constant 0 : i32
    %c0_i32_0 = arith.constant 0 : i32
    %c0_i32_1 = arith.constant 0 : i32
    return %arg0, %c0_i32, %arg1, %c0_i32_0 : i32, i32, i32, i32
  }
  func.func @transform_5(%arg0: i32, %arg1: i32) -> (i32, i32, i32, i32) {
    %c0_i32 = arith.constant 0 : i32
    %c0_i32_0 = arith.constant 0 : i32
    %c0_i32_1 = arith.constant 0 : i32
    return %arg0, %c0_i32, %arg1, %c0_i32_0 : i32, i32, i32, i32
  }
  func.func @transform_6(%arg0: i32, %arg1: i32) -> (i32, i32, i32, i32) {
    %c0_i32 = arith.constant 0 : i32
    %c0_i32_0 = arith.constant 0 : i32
    %c0_i32_1 = arith.constant 0 : i32
    return %arg0, %c0_i32, %arg1, %c0_i32_0 : i32, i32, i32, i32
  }
}

</mosaic_0001>

<llo_original>
// kernel: tpu_custom_call.1
$region0: #{tpu_custom_call.1}
  #allocation0 [shape = 'u32[]', space=smem, size = 0x4, offset = 0x4, fixed_abs, tag = 'smem constant byte address 0x4 - core index']
  #allocation1 [shape = 'u32[144,128]{1,0:T(1,128)}', space=vmem, size = 0x12000, scoped, tag = 'internal scratch']
  %s0 = inlined_call_operand.hbm [shape: f32[2,8,32], index: 0, kind: input, shape index: {}]
  %s1 = inlined_call_operand.hbm [shape: f32[1,32], index: 1, kind: input, shape index: {}]
  %s2 = inlined_call_operand.hbm [shape: f32[1,32], index: 2, kind: input, shape index: {}]
  %s3 = inlined_call_operand.hbm [shape: f32[32,96], index: 3, kind: input, shape index: {}]
  %s4 = inlined_call_operand.hbm [shape: f32[2,4,8,8], index: 4, kind: output, shape index: {0}]
  %s5 = inlined_call_operand.hbm [shape: f32[2,4,8,8], index: 5, kind: output, shape index: {1}]
  %s6 = inlined_call_operand.hbm [shape: f32[2,4,8,8], index: 6, kind: output, shape index: {2}]
  %7 = xla_tuple %s4, %s5, %s6
  %s8 = sld [smem:[#allocation0]]
  $region81: #{tpu_custom_call.1} parent=0
    _
  %s10 = ssub.s32 1, %s8
  %s11 = scalar_select 0, %s10, %s8
  $region1: #{tpu_custom_call.1} parent=0
    #allocation2 [shape = 'u8[8192]{0}', space=vmem, size = 0x2000, scoped, tag = 'input window, operand 0']
    #allocation3 [shape = 's32[2]{0}', space=sflag, size = 0x8, scoped, tag = 'scoped memory for tpu_custom_call.1']
    #allocation4 [shape = 's32[2]{0}', space=sflag, size = 0x8, scoped, tag = 'scoped memory for tpu_custom_call.1']
    #allocation5 [shape = 'u8[512]{0}', space=vmem, size = 0x400, scoped, tag = 'input window, operand 1, single buffered']
    #allocation6 [shape = 's32[1]{0}', space=sflag, size = 0x4, scoped, tag = 'scoped memory for tpu_custom_call.1']
    #allocation7 [shape = 'u8[512]{0}', space=vmem, size = 0x400, scoped, tag = 'input window, operand 2, single buffered']
    #allocation8 [shape = 'u8[16384]{0}', space=vmem, size = 0x4000, scoped, tag = 'input window, operand 3, single buffered']
    #allocation9 [shape = 's32[1]{0}', space=sflag, size = 0x4, scoped, tag = 'scoped memory for tpu_custom_call.1']
    #allocation10 [shape = 'u8[32768]{0}', space=vmem, size = 0x8000, scoped, tag = 'output window, operand 0']
    #allocation11 [shape = 'u8[32768]{0}', space=vmem, size = 0x8000, scoped, tag = 'output window, operand 1']
    #allocation12 [shape = 's32[2]{0}', space=sflag, size = 0x8, scoped, tag = 'scoped memory for tpu_custom_call.1']
    #allocation13 [shape = 'u8[32768]{0}', space=vmem, size = 0x8000, scoped, tag = 'output window, operand 2']
    %12 = vsyncpa [#allocation3], 0
    %s13 = scalar_lea.sflag [#allocation3], 1
    %14 = vsyncpa %s13, 0
    %15 = vsyncpa [#allocation6], 0
    %16 = vsyncpa [#allocation9], 0
    %17 = vsyncpa [#allocation4], 0
    %s18 = scalar_lea.sflag [#allocation4], 1
    %19 = vsyncpa %s18, 0
    %20 = vsyncpa [#allocation12], 0
    %s21 = scalar_lea.sflag [#allocation12], 1
    %22 = vsyncpa %s21, 0
    loop: start=0, step=1, limit=4
    $region2: #{tpu_custom_call.1} parent=1 // loop_pre_header
      _
    $region3: #{tpu_custom_call.1} parent=1 // loop_header
      %s24 = sphi 0, %s28
      %p25 = scmp.ge.s32.totalorder %s24, 4
      %s31 = sphi 0, %s43
      %s32 = sphi 0, %s39
      %s33 = sphi 0, %s31
      %s34 = sphi 0, %s32
      %s35 = sphi 0, %s33
      %s36 = sphi 0, %s34
      %s48 = sphi 0, %s50
      %s51 = sphi 0, %s48
      %s52 = sphi 0, %s51
      %s68 = sphi 0, %s52
      %s72 = sphi 0, %s72
      %s74 = sphi 0, %s72
      %s75 = sphi 0, %s74
      %s89 = sphi 0, %s75
      %s93 = sphi 0, %s93
      %s95 = sphi 0, %s93
      %s96 = sphi 0, %s95
      %s110 = sphi 0, %s96
      %s114 = sphi 0, %s114
      %s116 = sphi 0, %s114
      %s117 = sphi 0, %s116
      %s131 = sphi 0, %s117
      %s139 = sphi 0, %s141
      %s142 = sphi 0, %s139
      %s143 = sphi 0, %s142
      %s159 = sphi 0, %s143
      %s167 = sphi 0, %s169
      %s170 = sphi 0, %s167
      %s171 = sphi 0, %s170
      %s187 = sphi 0, %s171
      %s195 = sphi 0, %s197
      %s198 = sphi 0, %s195
      %s199 = sphi 0, %s198
      %s215 = sphi 0, %s199
    $region4: #{tpu_custom_call.1} parent=1 // loop_header_branch
      %27 = sbr.rel (%p25) target = $region8
    $region5: #{tpu_custom_call.1} parent=1 // loop_body
      %s29 = ssub.s32 %s24, 1
      %s30 = ssub.s32 %s24, 2
      %s37 = sadd.s32 1, %s32
      %p38 = scmp.ge.s32.totalorder %s37, 1
      %s39 = scalar_select %p38, 0, %s37
      %s40 = sadd.s32 1, %s31
      %s41 = scalar_select %p38, %s40, %s31
      %p42 = scmp.ge.s32.totalorder %s41, 2
      %s43 = scalar_select %p42, 0, %s41
      %s44 = ssub.s32 %s31, %s43
      %s45 = ssub.s32 %s32, %s39
      %s46 = sor.u32 %s44, %s45
      %p47 = scmp.eq.s32.totalorder %s46, 0
      %s49 = sadd.s32 %s48, 1
      %s50 = scalar_select %p47, %s48, %s49
      %p53 = pneg %p47
      %p54 = scmp.eq.s32.totalorder %s24, 1
      %p55 = por %p53, %p54
      %p56 = scmp.ne.s32.totalorder %s48, %s51
      %p57 = scmp.eq.s32.totalorder %s24, 0
      %p58 = por %p56, %p57
      %p59 = scmp.ne.s32.totalorder %s48, %s51
      %p60 = scmp.eq.s32.totalorder %s29, 1
      %p61 = por %p59, %p60
      %p62 = scmp.ne.s32.totalorder %s51, %s52
      %p63 = scmp.eq.s32.totalorder %s29, 0
      %p64 = por %p62, %p63
      %p65 = scmp.ne.s32.totalorder %s51, %s52
      %p66 = scmp.eq.s32.totalorder %s30, 1
      %p67 = por %p65, %p66
      %p69 = scmp.ne.s32.totalorder %s52, %s68
      %p70 = scmp.eq.s32.totalorder %s30, 0
      %p71 = por %p69, %p70
      %s73 = sadd.s32 %s72, 1
      %p76 = scmp.eq.s32.totalorder %s24, 1
      %p77 = scmp.ne.s32.totalorder %s72, %s74
      %p78 = scmp.eq.s32.totalorder %s24, 0
      %p79 = por %p77, %p78
      %p80 = scmp.ne.s32.totalorder %s72, %s74
      %p81 = scmp.eq.s32.totalorder %s29, 1
      %p82 = por %p80, %p81
      %p83 = scmp.ne.s32.totalorder %s74, %s75
      %p84 = scmp.eq.s32.totalorder %s29, 0
      %p85 = por %p83, %p84
      %p86 = scmp.ne.s32.totalorder %s74, %s75
      %p87 = scmp.eq.s32.totalorder %s30, 1
      %p88 = por %p86, %p87
      %p90 = scmp.ne.s32.totalorder %s75, %s89
      %p91 = scmp.eq.s32.totalorder %s30, 0
      %p92 = por %p90, %p91
      %s94 = sadd.s32 %s93, 1
      %p97 = scmp.eq.s32.totalorder %s24, 1
      %p98 = scmp.ne.s32.totalorder %s93, %s95
      %p99 = scmp.eq.s32.totalorder %s24, 0
      %p100 = por %p98, %p99
      %p101 = scmp.ne.s32.totalorder %s93, %s95
      %p102 = scmp.eq.s32.totalorder %s29, 1
      %p103 = por %p101, %p102
      %p104 = scmp.ne.s32.totalorder %s95, %s96
      %p105 = scmp.eq.s32.totalorder %s29, 0
      %p106 = por %p104, %p105
      %p107 = scmp.ne.s32.totalorder %s95, %s96
      %p108 = scmp.eq.s32.totalorder %s30, 1
      %p109 = por %p107, %p108
      %p111 = scmp.ne.s32.totalorder %s96, %s110
      %p112 = scmp.eq.s32.totalorder %s30, 0
      %p113 = por %p111, %p112
      %s115 = sadd.s32 %s114, 1
      %p118 = scmp.eq.s32.totalorder %s24, 1
      %p119 = scmp.ne.s32.totalorder %s114, %s116
      %p120 = scmp.eq.s32.totalorder %s24, 0
      %p121 = por %p119, %p120
      %p122 = scmp.ne.s32.totalorder %s114, %s116
      %p123 = scmp.eq.s32.totalorder %s29, 1
      %p124 = por %p122, %p123
      %p125 = scmp.ne.s32.totalorder %s116, %s117
      %p126 = scmp.eq.s32.totalorder %s29, 0
      %p127 = por %p125, %p126
      %p128 = scmp.ne.s32.totalorder %s116, %s117
      %p129 = scmp.eq.s32.totalorder %s30, 1
      %p130 = por %p128, %p129
      %p132 = scmp.ne.s32.totalorder %s117, %s131
      %p133 = scmp.eq.s32.totalorder %s30, 0
      %p134 = por %p132, %p133
      %s135 = ssub.s32 %s31, %s43
      %s136 = ssub.s32 %s32, %s39
      %s137 = sor.u32 %s135, %s136
      %p138 = scmp.eq.s32.totalorder %s137, 0
      %s140 = sadd.s32 %s139, 1
      %s141 = scalar_select %p138, %s139, %s140
      %p144 = pneg %p138
      %p145 = scmp.eq.s32.totalorder %s24, 1
      %p146 = por %p144, %p145
      %p147 = scmp.ne.s32.totalorder %s139, %s142
      %p148 = scmp.eq.s32.totalorder %s24, 0
      %p149 = por %p147, %p148
      %p150 = scmp.ne.s32.totalorder %s139, %s142
      %p151 = scmp.eq.s32.totalorder %s29, 1
      %p152 = por %p150, %p151
      %p153 = scmp.ne.s32.totalorder %s142, %s143
      %p154 = scmp.eq.s32.totalorder %s29, 0
      %p155 = por %p153, %p154
      %p156 = scmp.ne.s32.totalorder %s142, %s143
      %p157 = scmp.eq.s32.totalorder %s30, 1
      %p158 = por %p156, %p157
      %p160 = scmp.ne.s32.totalorder %s143, %s159
      %p161 = scmp.eq.s32.totalorder %s30, 0
      %p162 = por %p160, %p161
      %s163 = ssub.s32 %s31, %s43
      %s164 = ssub.s32 %s32, %s39
      %s165 = sor.u32 %s163, %s164
      %p166 = scmp.eq.s32.totalorder %s165, 0
      %s168 = sadd.s32 %s167, 1
      %s169 = scalar_select %p166, %s167, %s168
      %p172 = pneg %p166
      %p173 = scmp.eq.s32.totalorder %s24, 1
      %p174 = por %p172, %p173
      %p175 = scmp.ne.s32.totalorder %s167, %s170
      %p176 = scmp.eq.s32.totalorder %s24, 0
      %p177 = por %p175, %p176
      %p178 = scmp.ne.s32.totalorder %s167, %s170
      %p179 = scmp.eq.s32.totalorder %s29, 1
      %p180 = por %p178, %p179
      %p181 = scmp.ne.s32.totalorder %s170, %s171
      %p182 = scmp.eq.s32.totalorder %s29, 0
      %p183 = por %p181, %p182
      %p184 = scmp.ne.s32.totalorder %s170, %s171
      %p185 = scmp.eq.s32.totalorder %s30, 1
      %p186 = por %p184, %p185
      %p188 = scmp.ne.s32.totalorder %s171, %s187
      %p189 = scmp.eq.s32.totalorder %s30, 0
      %p190 = por %p188, %p189
      %s191 = ssub.s32 %s31, %s43
      %s192 = ssub.s32 %s32, %s39
      %s193 = sor.u32 %s191, %s192
      %p194 = scmp.eq.s32.totalorder %s193, 0
      %s196 = sadd.s32 %s195, 1
      %s197 = scalar_select %p194, %s195, %s196
      %p200 = pneg %p194
      %p201 = scmp.eq.s32.totalorder %s24, 1
      %p202 = por %p200, %p201
      %p203 = scmp.ne.s32.totalorder %s195, %s198
      %p204 = scmp.eq.s32.totalorder %s24, 0
      %p205 = por %p203, %p204
      %p206 = scmp.ne.s32.totalorder %s195, %s198
      %p207 = scmp.eq.s32.totalorder %s29, 1
      %p208 = por %p206, %p207
      %p209 = scmp.ne.s32.totalorder %s198, %s199
      %p210 = scmp.eq.s32.totalorder %s29, 0
      %p211 = por %p209, %p210
      %p212 = scmp.ne.s32.totalorder %s198, %s199
      %p213 = scmp.eq.s32.totalorder %s30, 1
      %p214 = por %p212, %p213
      %p216 = scmp.ne.s32.totalorder %s199, %s215
      %p217 = scmp.eq.s32.totalorder %s30, 0
      %p218 = por %p216, %p217
      %p219 = scmp.le.s32.totalorder 1, %s24
      %p220 = scmp.lt.s32.totalorder %s24, 3
      %p221 = pnand %p219, %p220
      %p222 = pneg %p221
      // Predicated region
      $region9: #{tpu_custom_call.1} parent=5 // pred_check
        _
      $region10: #{tpu_custom_call.1} parent=5 // pred_check_branch
        %224 = sbr.rel (%p221) target = $region12
      $region11: #{tpu_custom_call.1} parent=5 // pred_region
        %s225 = ssub.s32 %s24, 1
        // Predicated region
        $region13: #{tpu_custom_call.1} parent=11 // pred_check
          %p226 = pneg %p85
        $region14: #{tpu_custom_call.1} parent=11 // pred_check_branch
          %228 = sbr.rel (%p226) target = $region16
        $region15: #{tpu_custom_call.1} parent=11 // pred_region
          %s230 = ssub.s32 16, 16
          %231 = vsyncadd [#allocation6], %s230
          %s233 = sshll.u32 [#allocation5], 4
          %s234 = int_to_ptr.vmem [resolvable:$true] %s233
          %236 = dma.hbm_to_vmem [thread:$0]  %s1, 16, %s234, [#allocation6]
        $region16: #{tpu_custom_call.1} parent=11 // pred_fallthru
          _
        // Predicated region
        $region17: #{tpu_custom_call.1} parent=11 // pred_check
          %p237 = pneg %p106
        $region18: #{tpu_custom_call.1} parent=11 // pred_check_branch
          %239 = sbr.rel (%p237) target = $region20
        $region19: #{tpu_custom_call.1} parent=11 // pred_region
          %s241 = ssub.s32 16, 16
          %242 = vsyncadd [#allocation6], %s241
          %s244 = sshll.u32 [#allocation7], 4
          %s245 = int_to_ptr.vmem [resolvable:$true] %s244
          %247 = dma.hbm_to_vmem [thread:$0]  %s2, 16, %s245, [#allocation6]
        $region20: #{tpu_custom_call.1} parent=11 // pred_fallthru
          _
        // Predicated region
        $region21: #{tpu_custom_call.1} parent=11 // pred_check
          %p248 = pneg %p127
        $region22: #{tpu_custom_call.1} parent=11 // pred_check_branch
          %250 = sbr.rel (%p248) target = $region24
        $region23: #{tpu_custom_call.1} parent=11 // pred_region
          %s252 = ssub.s32 512, 512
          %253 = vsyncadd [#allocation9], %s252
          %s254 = sshll.u32 [#allocation8], 4
          %s255 = int_to_ptr.vmem [resolvable:$true] %s254
          %260 = dma.hbm_to_vmem [thread:$0]  %s3, 512, %s255, [#allocation9], 128, 128, 8
        $region24: #{tpu_custom_call.1} parent=11 // pred_fallthru
          _
      $region12: #{tpu_custom_call.1} parent=5 // pred_fallthru
        _
      %p261 = scmp.lt.s32.totalorder %s24, 2
      // Predicated region
      $region25: #{tpu_custom_call.1} parent=5 // pred_check
        %p262 = pneg %p261
      $region26: #{tpu_custom_call.1} parent=5 // pred_check_branch
        %264 = sbr.rel (%p262) target = $region28
      $region27: #{tpu_custom_call.1} parent=5 // pred_region
        // Predicated region
        $region29: #{tpu_custom_call.1} parent=27 // pred_check
          %p265 = pneg %p58
        $region30: #{tpu_custom_call.1} parent=27 // pred_check_branch
          %267 = sbr.rel (%p265) target = $region32
        $region31: #{tpu_custom_call.1} parent=27 // pred_region
          %s268 = sand.u32 %s48, 1
          %s269 = scalar_lea.sflag [#allocation3], %s268
          %s270 = sand.u32 %s48, 1
          %s271 = smul.addr %s270, 8
          %s272 = scalar_lea.vmem [#allocation2], %s271
          %s274 = ssub.s32 128, 128
          %275 = vsyncadd %s269, %s274
          %s276 = sadd.s32 %s32, %s31
          %s277 = smul.addr %s276, 128
          %s278 = scalar_lea.hbm %s0, %s277
          %s280 = sshll.u32 %s272, 4
          %s281 = int_to_ptr.vmem [resolvable:$true] %s280
          %283 = dma.hbm_to_vmem [thread:$0]  %s278, 128, %s281, %s269
        $region32: #{tpu_custom_call.1} parent=27 // pred_fallthru
          _
      $region28: #{tpu_custom_call.1} parent=5 // pred_fallthru
        _
      %p284 = scmp.le.s32.totalorder 1, %s24
      %p285 = scmp.lt.s32.totalorder %s24, 3
      %p286 = pnand %p284, %p285
      %p287 = pneg %p286
      // Predicated region
      $region33: #{tpu_custom_call.1} parent=5 // pred_check
        _
      $region34: #{tpu_custom_call.1} parent=5 // pred_check_branch
        %289 = sbr.rel (%p286) target = $region36
      $region35: #{tpu_custom_call.1} parent=5 // pred_region
        %s290 = ssub.s32 %s24, 1
        %s291 = sand.u32 %s51, 1
        %s292 = scalar_lea.sflag [#allocation3], %s291
        %s293 = sand.u32 %s51, 1
        %s294 = smul.addr %s293, 8
        %s295 = scalar_lea.vmem [#allocation2], %s294
        // Predicated region
        $region37: #{tpu_custom_call.1} parent=35 // pred_check
          %p296 = pneg %p64
        $region38: #{tpu_custom_call.1} parent=35 // pred_check_branch
          %298 = sbr.rel (%p296) target = $region40
        $region39: #{tpu_custom_call.1} parent=35 // pred_region
          %299 = dma.done %s292, 128
        $region40: #{tpu_custom_call.1} parent=35 // pred_fallthru
          _
        // Predicated region
        $region41: #{tpu_custom_call.1} parent=35 // pred_check
          %p300 = pneg %p85
        $region42: #{tpu_custom_call.1} parent=35 // pred_check_branch
          %302 = sbr.rel (%p300) target = $region44
        $region43: #{tpu_custom_call.1} parent=35 // pred_region
          %303 = dma.done [#allocation6], 16
        $region44: #{tpu_custom_call.1} parent=35 // pred_fallthru
          _
        // Predicated region
        $region45: #{tpu_custom_call.1} parent=35 // pred_check
          %p304 = pneg %p106
        $region46: #{tpu_custom_call.1} parent=35 // pred_check_branch
          %306 = sbr.rel (%p304) target = $region48
        $region47: #{tpu_custom_call.1} parent=35 // pred_region
          %307 = dma.done [#allocation6], 16
        $region48: #{tpu_custom_call.1} parent=35 // pred_fallthru
          _
        // Predicated region
        $region49: #{tpu_custom_call.1} parent=35 // pred_check
          %p308 = pneg %p127
        $region50: #{tpu_custom_call.1} parent=35 // pred_check_branch
          %310 = sbr.rel (%p308) target = $region52
        $region51: #{tpu_custom_call.1} parent=35 // pred_region
          %311 = dma.done [#allocation9], 512
        $region52: #{tpu_custom_call.1} parent=35 // pred_fallthru
          _
        %s312 = sand.u32 %s51, 1
        %s313 = scalar_lea.sflag [#allocation3], %s312
        %s314 = sand.u32 %s51, 1
        %s315 = smul.addr %s314, 8
        %s316 = scalar_lea.vmem [#allocation2], %s315
        %p317 = pneg %p64
        %p318 = pneg %p61
        %p319 = pneg %p85
        %p320 = pneg %p82
        %p321 = pneg %p106
        %p322 = pneg %p103
        %p323 = pneg %p127
        %p324 = pneg %p124
        %p325 = pneg %p155
        %p326 = pneg %p152
        %s327 = sand.u32 %s142, 1
        %s328 = scalar_lea.sflag [#allocation4], %s327
        %s329 = sand.u32 %s142, 1
        %s330 = smul.addr %s329, 32
        %s331 = scalar_lea.vmem [#allocation10], %s330
        %p332 = pneg %p183
        %p333 = pneg %p180
        %s334 = sand.u32 %s29, 1
        %s335 = scalar_lea.sflag [#allocation12], %s334
        %s336 = sand.u32 %s170, 1
        %s337 = smul.addr %s336, 32
        %s338 = scalar_lea.vmem [#allocation11], %s337
        %p339 = pneg %p211
        %p340 = pneg %p208
        %s341 = sand.u32 %s29, 1
        %s342 = scalar_lea.sflag [#allocation12], %s341
        %s343 = sand.u32 %s198, 1
        %s344 = smul.addr %s343, 32
        %s345 = scalar_lea.vmem [#allocation13], %s344
        %v346 = vld [vmem:[%s295] sm:$0xff]
        %v347 = vld [vmem:[#allocation5] sm:$0x1]
        %v348 = vld [vmem:[#allocation7] sm:$0x1]
        %vm349 = vcmask 261120
        %v350 = vsel %vm349, %v346, 0.0
        %351 = vadd.xlane.f32.xlu0 %v350
        %v352 = vpop.xlane.xlu0 %351
        %v353 = vrcp.pop 32.0
        %v354 = vmul.f32 %v352, %v353
        %v355 = vsub.f32 %v346, %v354
        %v356 = vmul.f32 %v355, %v355
        %v357 = vsel %vm349, %v356, 0.0
        %358 = vadd.xlane.f32.xlu0 %v357
        %v359 = vpop.xlane.xlu0 %358
        %v360 = vmul.f32 %v359, %v353
        %v361 = vadd.f32 %v360, 1e-05
        %v362 = vrsqrt.pop %v361
        %v363 = vmul.f32 %v355, %v362
        %v365 = vlaneseq
        %v366 = vshrl.u32 %v365, 7
        %v367 = vsub.s32 0, %v366
        %v368 = vrot.slane %v347, %v367
        %v370 = vmul.f32 %v363, %v368
        %v372 = vlaneseq
        %v373 = vshrl.u32 %v372, 7
        %v374 = vsub.s32 0, %v373
        %v375 = vrot.slane %v348, %v374
        %v377 = vadd.f32 %v370, %v375
        %v378 = vld [vmem:[#allocation8] sm:$0xff]
        %v379 = vld [vmem:[#allocation8 + $0x8] sm:$0xff]
        %v380 = vld [vmem:[#allocation8 + $0x10] sm:$0xff]
        %v381 = vld [vmem:[#allocation8 + $0x18] sm:$0xff]
        %v383 = vsel %vm349, %v377, 0
        %385 = vmatprep.subr.mxu0 0.0
        %386 = vmatpush1.msra.mxu0 %v378
        %387 = vmatprep.subr.mxu0 0.0
        %388 = vmatpush1.msra.mxu0 %v379
        %389 = vmatprep.subr.mxu0 0.0
        %390 = vmatpush1.msra.mxu0 %v380
        %391 = vmatprep.subr.mxu0 0.0
        %392 = vmatpush1.msra.mxu0 %v381
        %393 = vmatprep.subr.mxu0 0.0
        %394 = vmatpush1.msra.mxu0 0.0
        %395 = vmatprep.subr.mxu0 0.0
        %396 = vmatpush1.msra.mxu0 0.0
        %397 = vmatprep.subr.mxu0 0.0
        %398 = vmatpush1.msra.mxu0 0.0
        %399 = vmatprep.subr.mxu0 0.0
        %400 = vmatpush1.msra.mxu0 0.0
        %401 = vmatprep.subr.mxu0 0.0
        %402 = vmatpush1.msra.mxu0 0.0
        %403 = vmatprep.subr.mxu0 0.0
        %404 = vmatpush1.msra.mxu0 0.0
        %405 = vmatprep.subr.mxu0 0.0
        %406 = vmatpush1.msra.mxu0 0.0
        %407 = vmatprep.subr.mxu0 0.0
        %408 = vmatpush1.msra.mxu0 0.0
        %409 = vmatprep.subr.mxu0 0.0
        %410 = vmatpush1.msra.mxu0 0.0
        %411 = vmatprep.subr.mxu0 0.0
        %412 = vmatpush1.msra.mxu0 0.0
        %413 = vmatprep.subr.mxu0 0.0
        %414 = vmatpush1.msra.mxu0 0.0
        %415 = vmatprep.subr.mxu0 0.0
        %416 = vmatpush1.msra.mxu0 0.0
        %417 = vmatprep.subr.mxu0 0.0
        %418 = vmatpush1.msra.mxu0 0.0
        %419 = vmatprep.subr.mxu0 0.0
        %420 = vmatpush1.msra.mxu0 0.0
        %421 = vmatprep.subr.mxu0 0.0
        %422 = vmatpush1.msra.mxu0 0.0
        %423 = vmatprep.subr.mxu0 0.0
        %424 = vmatpush1.msra.mxu0 0.0
        %425 = vmatprep.subr.mxu0 0.0
        %426 = vmatpush1.msra.mxu0 0.0
        %427 = vmatprep.subr.mxu0 0.0
        %428 = vmatpush1.msra.mxu0 0.0
        %429 = vmatprep.subr.mxu0 0.0
        %430 = vmatpush1.msra.mxu0 0.0
        %431 = vmatprep.subr.mxu0 0.0
        %432 = vmatpush1.msra.mxu0 0.0
        %433 = vmatprep.subr.mxu0 0.0
        %434 = vmatpush1.msra.mxu0 0.0
        %435 = vmatprep.subr.mxu0 0.0
        %436 = vmatpush1.msra.mxu0 0.0
        %437 = vmatprep.subr.mxu0 0.0
        %438 = vmatpush1.msra.mxu0 0.0
        %439 = vmatprep.subr.mxu0 0.0
        %440 = vmatpush1.msra.mxu0 0.0
        %441 = vmatprep.subr.mxu0 0.0
        %442 = vmatpush1.msra.mxu0 0.0
        %443 = vmatprep.subr.mxu0 0.0
        %444 = vmatpush1.msra.mxu0 0.0
        %445 = vmatprep.subr.mxu0 0.0
        %446 = vmatpush1.msra.mxu0 0.0
        %447 = vmatprep.subr.mxu0 0.0
        %448 = vmatpush1.msra.mxu0 0.0
        %449 = vmatprep.mubr.f32.mxu0 0.0
        %450 = vmatmul.mubr.f32.gmra.mrb[0].mxu0 %v383
        %v451 = vpop.f32.mrb[0].mxu0
        %v452 = vadd.f32 0.0, %v451
        %v453 = vpop.f32.mrb[0].mxu0
        %454 = vdwg.mxu0
        %v455 = vmul.f32 %v452, 0.35355338
        %vm456 = vcmask 64512
        %457 = vst.msk [vmem:[%s331] sm:$0xff] %vm456, %v455
        %459 = vrot.lane.b32.xlu0 %v452, 96
        %v460 = vpop.permute.xlu0 %459
        %462 = vst.msk [vmem:[%s338] sm:$0xff] %vm456, %v460
        %463 = vrot.lane.b32.xlu0 %v452, 64
        %v464 = vpop.permute.xlu0 %463
        %466 = vst.msk [vmem:[%s345] sm:$0xff] %vm456, %v464
        %468 = vrot.lane.b32.xlu0 %v455, 120
        %v469 = vpop.permute.xlu0 %468
        %s471 = scalar_lea.vmem %s331, 8 [#allocation10]
        %472 = vst.msk [vmem:[%s471] sm:$0xff] %vm456, %v469
        %473 = vrot.lane.b32.xlu0 %v452, 88
        %v474 = vpop.permute.xlu0 %473
        %s476 = scalar_lea.vmem %s338, 8 [#allocation11]
        %477 = vst.msk [vmem:[%s476] sm:$0xff] %vm456, %v474
        %478 = vrot.lane.b32.xlu0 %v452, 56
        %v479 = vpop.permute.xlu0 %478
        %s481 = scalar_lea.vmem %s345, 8 [#allocation13]
        %482 = vst.msk [vmem:[%s481] sm:$0xff] %vm456, %v479
        %483 = vrot.lane.b32.xlu0 %v455, 112
        %v484 = vpop.permute.xlu0 %483
        %s486 = scalar_lea.vmem %s331, 16 [#allocation10]
        %487 = vst.msk [vmem:[%s486] sm:$0xff] %vm456, %v484
        %488 = vrot.lane.b32.xlu0 %v452, 80
        %v489 = vpop.permute.xlu0 %488
        %s491 = scalar_lea.vmem %s338, 16 [#allocation11]
        %492 = vst.msk [vmem:[%s491] sm:$0xff] %vm456, %v489
        %493 = vrot.lane.b32.xlu0 %v452, 48
        %v494 = vpop.permute.xlu0 %493
        %s496 = scalar_lea.vmem %s345, 16 [#allocation13]
        %497 = vst.msk [vmem:[%s496] sm:$0xff] %vm456, %v494
        %498 = vrot.lane.b32.xlu0 %v455, 104
        %v499 = vpop.permute.xlu0 %498
        %s501 = scalar_lea.vmem %s331, 24 [#allocation10]
        %502 = vst.msk [vmem:[%s501] sm:$0xff] %vm456, %v499
        %503 = vrot.lane.b32.xlu0 %v452, 72
        %v504 = vpop.permute.xlu0 %503
        %s506 = scalar_lea.vmem %s338, 24 [#allocation11]
        %507 = vst.msk [vmem:[%s506] sm:$0xff] %vm456, %v504
        %508 = vrot.lane.b32.xlu0 %v452, 40
        %v509 = vpop.permute.xlu0 %508
        %s511 = scalar_lea.vmem %s345, 24 [#allocation13]
        %512 = vst.msk [vmem:[%s511] sm:$0xff] %vm456, %v509
        %s513 = sand.u32 %s142, 1
        %s514 = scalar_lea.sflag [#allocation4], %s513
        %s515 = sand.u32 %s142, 1
        %s516 = smul.addr %s515, 32
        %s517 = scalar_lea.vmem [#allocation10], %s516
        %s518 = sand.u32 %s29, 1
        %s519 = scalar_lea.sflag [#allocation12], %s518
        %s520 = sand.u32 %s170, 1
        %s521 = smul.addr %s520, 32
        %s522 = scalar_lea.vmem [#allocation11], %s521
        %s523 = sand.u32 %s29, 1
        %s524 = scalar_lea.sflag [#allocation12], %s523
        %s525 = sand.u32 %s198, 1
        %s526 = smul.addr %s525, 32
        %s527 = scalar_lea.vmem [#allocation13], %s526
        // Predicated region
        $region53: #{tpu_custom_call.1} parent=35 // pred_check
          %p528 = pneg %p152
        $region54: #{tpu_custom_call.1} parent=35 // pred_check_branch
          %530 = sbr.rel (%p528) target = $region56
        $region55: #{tpu_custom_call.1} parent=35 // pred_region
          %s532 = ssub.s32 512, 512
          %533 = vsyncadd %s514, %s532
          %s534 = smul.addr %s33, 4
          %s535 = sadd.s32 %s34, %s534
          %s536 = smul.addr %s535, 128
          %s537 = scalar_lea.hbm %s4, %s536
          %s538 = sshll.u32 %s517, 4
          %s539 = int_to_ptr.vmem [resolvable:$true] %s538
          %544 = dma.vmem_to_hbm [thread:$0]  %s539, 512, %s537, %s514, 128, 128, 8
        $region56: #{tpu_custom_call.1} parent=35 // pred_fallthru
          _
        // Predicated region
        $region57: #{tpu_custom_call.1} parent=35 // pred_check
          %p545 = pneg %p180
        $region58: #{tpu_custom_call.1} parent=35 // pred_check_branch
          %547 = sbr.rel (%p545) target = $region60
        $region59: #{tpu_custom_call.1} parent=35 // pred_region
          %s549 = ssub.s32 512, 512
          %550 = vsyncadd %s519, %s549
          %s551 = smul.addr %s33, 4
          %s552 = sadd.s32 %s34, %s551
          %s553 = smul.addr %s552, 128
          %s554 = scalar_lea.hbm %s5, %s553
          %s555 = sshll.u32 %s522, 4
          %s556 = int_to_ptr.vmem [resolvable:$true] %s555
          %561 = dma.vmem_to_hbm [thread:$0]  %s556, 512, %s554, %s519, 128, 128, 8
        $region60: #{tpu_custom_call.1} parent=35 // pred_fallthru
          _
        // Predicated region
        $region61: #{tpu_custom_call.1} parent=35 // pred_check
          %p562 = pneg %p208
        $region62: #{tpu_custom_call.1} parent=35 // pred_check_branch
          %564 = sbr.rel (%p562) target = $region64
        $region63: #{tpu_custom_call.1} parent=35 // pred_region
          %s566 = ssub.s32 512, 512
          %567 = vsyncadd %s524, %s566
          %s568 = smul.addr %s33, 4
          %s569 = sadd.s32 %s34, %s568
          %s570 = smul.addr %s569, 128
          %s571 = scalar_lea.hbm %s6, %s570
          %s572 = sshll.u32 %s527, 4
          %s573 = int_to_ptr.vmem [resolvable:$true] %s572
          %578 = dma.vmem_to_hbm [thread:$0]  %s573, 512, %s571, %s524, 128, 128, 8
        $region64: #{tpu_custom_call.1} parent=35 // pred_fallthru
          _
      $region36: #{tpu_custom_call.1} parent=5 // pred_fallthru
        _
      %p579 = scmp.le.s32.totalorder 2, %s24
      // Predicated region
      $region65: #{tpu_custom_call.1} parent=5 // pred_check
        %p580 = pneg %p579
      $region66: #{tpu_custom_call.1} parent=5 // pred_check_branch
        %582 = sbr.rel (%p580) target = $region68
      $region67: #{tpu_custom_call.1} parent=5 // pred_region
        %s583 = ssub.s32 %s24, 2
        // Predicated region
        $region69: #{tpu_custom_call.1} parent=67 // pred_check
          %p584 = pneg %p158
        $region70: #{tpu_custom_call.1} parent=67 // pred_check_branch
          %586 = sbr.rel (%p584) target = $region72
        $region71: #{tpu_custom_call.1} parent=67 // pred_region
          %s587 = sand.u32 %s143, 1
          %s588 = scalar_lea.sflag [#allocation4], %s587
          %s589 = sand.u32 %s143, 1
          %s590 = smul.addr %s589, 32
          %s591 = scalar_lea.vmem [#allocation10], %s590
          %592 = dma.done %s588, 512
        $region72: #{tpu_custom_call.1} parent=67 // pred_fallthru
          _
        // Predicated region
        $region73: #{tpu_custom_call.1} parent=67 // pred_check
          %p593 = pneg %p186
        $region74: #{tpu_custom_call.1} parent=67 // pred_check_branch
          %595 = sbr.rel (%p593) target = $region76
        $region75: #{tpu_custom_call.1} parent=67 // pred_region
          %s596 = sand.u32 %s30, 1
          %s597 = scalar_lea.sflag [#allocation12], %s596
          %s598 = sand.u32 %s171, 1
          %s599 = smul.addr %s598, 32
          %s600 = scalar_lea.vmem [#allocation11], %s599
          %601 = dma.done %s597, 512
        $region76: #{tpu_custom_call.1} parent=67 // pred_fallthru
          _
        // Predicated region
        $region77: #{tpu_custom_call.1} parent=67 // pred_check
          %p602 = pneg %p214
        $region78: #{tpu_custom_call.1} parent=67 // pred_check_branch
          %604 = sbr.rel (%p602) target = $region80
        $region79: #{tpu_custom_call.1} parent=67 // pred_region
          %s605 = sand.u32 %s30, 1
          %s606 = scalar_lea.sflag [#allocation12], %s605
          %s607 = sand.u32 %s199, 1
          %s608 = smul.addr %s607, 32
          %s609 = scalar_lea.vmem [#allocation13], %s608
          %610 = dma.done %s606, 512
        $region80: #{tpu_custom_call.1} parent=67 // pred_fallthru
          _
      $region68: #{tpu_custom_call.1} parent=5 // pred_fallthru
        _
    $region6: #{tpu_custom_call.1} parent=1 // loop_footer
      %s28 = sadd.s32 1, %s24
    $region7: #{tpu_custom_call.1} parent=1 // loop_footer_branch
      %23 = sbr.rel target = $region3
    $region8: #{tpu_custom_call.1} parent=1 // loop_exit
      _
    %611 = vsyncpa [#allocation3], 1
    %s612 = scalar_lea.sflag [#allocation3], 1
    %613 = vsyncpa %s612, 1
    %614 = vsyncpa [#allocation6], 1
    %615 = vsyncpa [#allocation9], 1
    %616 = vsyncpa [#allocation4], 1
    %s617 = scalar_lea.sflag [#allocation4], 1
    %618 = vsyncpa %s617, 1
    %619 = vsyncpa [#allocation12], 1
    %s620 = scalar_lea.sflag [#allocation12], 1
    %621 = vsyncpa %s620, 1

</llo_original>
